<compile_context>
chip_gen: v7x
topology: tpu7x:2x2x1
jax: 0.10.0
libtpu: 0.0.40
codegen_flags: <defaults>
</compile_context>

<pallas_src>
import math

import jax
import jax.numpy as jnp
from jax.experimental import pallas as pl
from jax.experimental.pallas import tpu as pltpu


def _energy_kernel(bidx_ref, hb_ref, enc_ref, w2_ref, v_ref, out_ref, hbig_ref):
    """One T-tile of attention energies, interleaved (t-major, b-minor) row order.

    bidx_ref: (R, 1) int32  batch index of each tile row (row j of enc2d -> b = j % B)
    hb_ref:   (B, H) f32    hidden @ W1 + bias (T-invariant, hoisted to wrapper)
    enc_ref:  (R, H) cdt    contiguous slice of encoder_outputs.reshape(T*B, H)
    w2_ref:   (H, H) cdt    encoder half of the attention weight (transposed)
    v_ref:    (H, 1) f32    scoring vector
    out_ref:  (R, 1) f32    raw attention energies for this tile
    hbig_ref: (R, H) f32    scratch: hb broadcast to all tile rows (built once)
    """
    B = hb_ref.shape[0]
    R = enc_ref.shape[0]

    @pl.when(pl.program_id(0) == 0)
    def _init():
        # hbig[j, :] = hb[j % B, :] via a one-hot selection matmul on the MXU.
        col = jax.lax.broadcasted_iota(jnp.int32, (R, B), 1)
        sel = (bidx_ref[...] == col).astype(jnp.float32)              # (R, B)
        hbig_ref[...] = jnp.dot(sel, hb_ref[...],
                                preferred_element_type=jnp.float32)   # (R, H) f32

    # Encoder projection for this tile (MXU, f32 accumulation, native 2-D layout).
    proj = jnp.dot(enc_ref[...], w2_ref[...],
                   preferred_element_type=jnp.float32)                # (R, H) f32
    energy = jnp.tanh(proj + hbig_ref[...])                           # (R, H) f32
    # H-reduction against v on the MXU (keeps VPU/XLU slots free).
    out_ref[...] = jnp.dot(energy, v_ref[...],
                           preferred_element_type=jnp.float32)        # (R, 1) f32


def _vmem_limit_bytes():
    try:
        info = pltpu.get_tpu_info()
        cap = int(getattr(info, "vmem_capacity_bytes", 0))
        if cap > 0:
            return max(32 << 20, min((cap * 3) // 4, 96 << 20))
    except Exception:
        pass
    return 32 << 20  # safe default (== default scoped limit on all chips)


def attn_forward(hidden, encoder_outputs, W, b, v, src_len=None):
    """Bahdanau attention forward.

    hidden:          (1, B, H)
    encoder_outputs: (T, B, H)   native PyTorch layout, consumed without transpose
    W: (H, 2H), b: (H,), v: (H,)
    src_len: optional (B,) lengths for masking
    returns: (B, 1, T) float32 attention weights
    """
    T, B, H = encoder_outputs.shape
    cdt = encoder_outputs.dtype
    csz = jnp.dtype(cdt).itemsize

    # Linear on the concatenation == split matmuls (no concat materialized):
    #   concat([hid, enc], -1) @ W.T == hid @ W[:, :H].T + enc @ W[:, H:].T
    w1 = W[:, :H].T.astype(cdt)
    w2 = W[:, H:].T.astype(cdt)
    hid = hidden[0].astype(cdt)                                        # (B, H)
    # T-invariant hidden projection + bias, hoisted out of the kernel (tiny).
    hb = (jnp.dot(hid, w1, preferred_element_type=jnp.float32)
          + b.astype(jnp.float32)[None, :])                            # (B, H) f32
    v_col = v.astype(jnp.float32).reshape(H, 1)

    enc2d = encoder_outputs.reshape(T * B, H)      # free: (T,B,H) is contiguous

    # ---------------- VMEM-aware T tiling ------------------------------------
    vmem_limit = _vmem_limit_bytes()
    # Per tile row: enc (double-buffered) + hbig scratch + ~2 f32 temps + sel col.
    bytes_per_row = H * (2 * csz + 4 + 8) + 4 * max(B, 8)
    fixed = 2 * H * H * csz + 2 * B * H * 4 + 2 * H * 4 + (2 << 20)
    budget = max(bytes_per_row * 8, vmem_limit - fixed)
    tile_t_max = max(1, budget // (bytes_per_row * B))

    if tile_t_max >= T:
        tile_t, n_t = T, 1
    else:
        tile_t = 0
        for align in (1024, 512, 256, 128, 64, 32, 16, 8):
            if tile_t_max >= align:
                tile_t = (tile_t_max // align) * align
                break
        if tile_t == 0:
            # Pathological (enormous B*H): keep the block sublane-legal anyway.
            g = 8 // math.gcd(8, B)
            tile_t = g * max(1, tile_t_max // g)
        n_t = -(-T // tile_t)
    T_pad = n_t * tile_t
    R = tile_t * B

    b_idx = (jnp.arange(R, dtype=jnp.int32) % B).reshape(R, 1)

    energies = pl.pallas_call(
        _energy_kernel,
        out_shape=jax.ShapeDtypeStruct((T_pad * B, 1), jnp.float32),
        grid_spec=pltpu.PrefetchScalarGridSpec(
            num_scalar_prefetch=0,
            grid=(n_t,),
            in_specs=[
                pl.BlockSpec((R, 1), lambda ti: (0, 0)),      # b_idx  (resident)
                pl.BlockSpec((B, H), lambda ti: (0, 0)),      # hb     (resident)
                pl.BlockSpec((R, H), lambda ti: (ti, 0)),     # enc2d  (streamed)
                pl.BlockSpec((H, H), lambda ti: (0, 0)),      # w2     (resident)
                pl.BlockSpec((H, 1), lambda ti: (0, 0)),      # v      (resident)
            ],
            out_specs=pl.BlockSpec((R, 1), lambda ti: (ti, 0)),
            scratch_shapes=[pltpu.VMEM((R, H), jnp.float32)],  # hbig
        ),
        compiler_params=pltpu.CompilerParams(
            dimension_semantics=("arbitrary",),
            vmem_limit_bytes=vmem_limit,
        ),
    )(b_idx, hb, enc2d, w2, v_col)

    # Tiny epilogue on the (T, B) f32 energies (~T*B*4 bytes, a factor ~H smaller
    # than the streamed input): ragged-tail discard, src_len mask, exact softmax.
    scores_tb = energies.reshape(T_pad, B)[:T]                 # (T, B)
    if src_len is not None:
        lens = jnp.minimum(src_len.astype(jnp.int32), T)       # (B,)
        keep = jnp.arange(T, dtype=jnp.int32)[:, None] < lens[None, :]
        scores_tb = jnp.where(keep, scores_tb, -1e18)          # torch masked_fill value
    m = jnp.max(scores_tb, axis=0, keepdims=True)
    p = jnp.exp(scores_tb - m)
    attn_tb = p / jnp.sum(p, axis=0, keepdims=True)            # softmax over T, f32
    return jnp.transpose(attn_tb)[:, None, :]                  # (B, 1, T)


if __name__ == "__main__":
    B, T, H = 2, 8, 32
    key = jax.random.PRNGKey(0)
    k1, k2, k3, k4, k5 = jax.random.split(key, 5)

    # Deterministic inputs in PyTorch layouts; big tensors in bf16 (MXU-native).
    hidden = jax.random.normal(k1, (1, B, H), jnp.float32).astype(jnp.bfloat16)
    encoder_outputs = jax.random.normal(k2, (T, B, H), jnp.float32).astype(jnp.bfloat16)

    # Parameter init mimicking nn.Linear(2H, H) and v ~ N(0, 1/sqrt(H)).
    bound = 1.0 / math.sqrt(2.0 * H)
    W = jax.random.uniform(k3, (H, 2 * H), jnp.float32, -bound, bound)
    b = jax.random.uniform(k4, (H,), jnp.float32, -bound, bound)
    v = jax.random.normal(k5, (H,), jnp.float32) * (1.0 / math.sqrt(H))

    out = attn_forward(hidden, encoder_outputs, W, b, v)
    out = jax.block_until_ready(out)

    # Pure-JAX reference (same bf16-rounded operands, f32 math).
    hid_f = hidden[0].astype(jnp.float32)                                   # (B, H)
    enc_f = jnp.transpose(encoder_outputs, (1, 0, 2)).astype(jnp.float32)   # (B, T, H)
    w1_f = W[:, :H].T.astype(jnp.bfloat16).astype(jnp.float32)
    w2_f = W[:, H:].T.astype(jnp.bfloat16).astype(jnp.float32)
    e_ref = jnp.tanh(enc_f @ w2_f + (hid_f @ w1_f)[:, None, :] + b[None, None, :])
    s_ref = jnp.sum(e_ref * v[None, None, :], axis=-1)                      # (B, T)
    ref = jax.nn.softmax(s_ref, axis=-1)[:, None, :]                        # (B, 1, T)

    assert out.shape == (B, 1, T), out.shape
    assert jnp.allclose(jnp.sum(out, axis=-1), 1.0, atol=1e-5)
    assert jnp.allclose(out, ref, atol=2e-3), float(jnp.max(jnp.abs(out - ref)))

    # src_len masking path (torch masked_fill(-1e18) semantics).
    src_len = jnp.array([T, 5], dtype=jnp.int32)
    out_m = jax.block_until_ready(
        attn_forward(hidden, encoder_outputs, W, b, v, src_len=src_len))
    s_m = jnp.where(jnp.arange(T)[None, :] < src_len[:, None], s_ref, -1e18)
    ref_m = jax.nn.softmax(s_m, axis=-1)[:, None, :]
    assert out_m.shape == (B, 1, T)
    assert jnp.allclose(out_m, ref_m, atol=2e-3), float(jnp.max(jnp.abs(out_m - ref_m)))

    print("KERNEL_OK")
</pallas_src>

<mosaic_0001>
module attributes {stable_mosaic.version = 11 : i64} {
  func.func @_energy_kernel(%arg0: i32, %arg1: memref<16x1xi32, #tpu.memory_space<vmem>>, %arg2: memref<2x32xf32, #tpu.memory_space<vmem>>, %arg3: memref<16x32xbf16, #tpu.memory_space<vmem>>, %arg4: memref<32x32xbf16, #tpu.memory_space<vmem>>, %arg5: memref<32x1xf32, #tpu.memory_space<vmem>>, %arg6: memref<16x1xf32, #tpu.memory_space<vmem>>, %arg7: memref<16x32xf32, #tpu.memory_space<vmem>>) attributes {dimension_semantics = [#tpu.dimension_semantics<arbitrary>], iteration_bounds = array<i64: 1>, scalar_prefetch = 0 : i64, scratch_operands = 1 : i64, tpu.core_type = #tpu.core_type<tc>, window_params = [{pipeline_mode = #tpu.pipeline_mode<synchronous>, transform_indices = @transform_0, window_bounds = array<i64: 16, 1>}, {pipeline_mode = #tpu.pipeline_mode<synchronous>, transform_indices = @transform_1, window_bounds = array<i64: 2, 32>}, {transform_indices = @transform_2, window_bounds = array<i64: 16, 32>}, {pipeline_mode = #tpu.pipeline_mode<synchronous>, transform_indices = @transform_3, window_bounds = array<i64: 32, 32>}, {pipeline_mode = #tpu.pipeline_mode<synchronous>, transform_indices = @transform_4, window_bounds = array<i64: 32, 1>}, {transform_indices = @transform_5, window_bounds = array<i64: 16, 1>}]} {
    %c0_i32 = arith.constant 0 : i32
    %0 = arith.cmpi eq, %arg0, %c0_i32 : i32
    %1 = arith.extui %0 : i1 to i32
    %c0_i32_0 = arith.constant 0 : i32
    %2 = arith.cmpi ne, %1, %c0_i32_0 : i32
    scf.if %2 {
      %12 = tpu.iota {dimensions = array<i32: 1>} : vector<16x2xi32>
      %c0_11 = arith.constant 0 : index
      %c0_12 = arith.constant 0 : index
      %13 = vector.load %arg1[%c0_11, %c0_12] : memref<16x1xi32, #tpu.memory_space<vmem>>, vector<16x1xi32>
      %14 = vector.broadcast %13 : vector<16x1xi32> to vector<16x2xi32>
      %15 = arith.cmpi eq, %14, %12 : vector<16x2xi32>
      %16 = arith.extui %15 : vector<16x2xi1> to vector<16x2xi32>
      %17 = arith.sitofp %16 : vector<16x2xi32> to vector<16x2xf32>
      %c0_13 = arith.constant 0 : index
      %c0_14 = arith.constant 0 : index
      %18 = vector.load %arg2[%c0_13, %c0_14] : memref<2x32xf32, #tpu.memory_space<vmem>>, vector<2x32xf32>
      %cst_15 = arith.constant dense<0.000000e+00> : vector<16x32xf32>
      %19 = tpu.matmul %17, %18, %cst_15 {dimension_numbers = #tpu.dot_dimension_numbers<[1], [0], [0], [1], [0, 0, 1, 1], [], []>} : vector<16x2xf32>, vector<2x32xf32>, vector<16x32xf32> -> vector<16x32xf32>
      %c0_16 = arith.constant 0 : index
      %c0_17 = arith.constant 0 : index
      %20 = vector.load %arg7[%c0_16, %c0_17] : memref<16x32xf32, #tpu.memory_space<vmem>>, vector<16x32xf32>
      tpu.vector_store %arg7[%c0_16, %c0_17], %19 {strides = array<i32>} : memref<16x32xf32, #tpu.memory_space<vmem>>, vector<16x32xf32>,
    } else {
    }
    %c0 = arith.constant 0 : index
    %c0_1 = arith.constant 0 : index
    %3 = vector.load %arg3[%c0, %c0_1] : memref<16x32xbf16, #tpu.memory_space<vmem>>, vector<16x32xbf16>
    %c0_2 = arith.constant 0 : index
    %c0_3 = arith.constant 0 : index
    %4 = vector.load %arg4[%c0_2, %c0_3] : memref<32x32xbf16, #tpu.memory_space<vmem>>, vector<32x32xbf16>
    %cst = arith.constant dense<0.000000e+00> : vector<16x32xf32>
    %5 = tpu.matmul %3, %4, %cst {dimension_numbers = #tpu.dot_dimension_numbers<[1], [0], [0], [1], [0, 0, 1, 1], [], []>} : vector<16x32xbf16>, vector<32x32xbf16>, vector<16x32xf32> -> vector<16x32xf32>
    %c0_4 = arith.constant 0 : index
    %c0_5 = arith.constant 0 : index
    %6 = vector.load %arg7[%c0_4, %c0_5] : memref<16x32xf32, #tpu.memory_space<vmem>>, vector<16x32xf32>
    %7 = arith.addf %5, %6 : vector<16x32xf32>
    %8 = math.tanh %7 : vector<16x32xf32>
    %c0_6 = arith.constant 0 : index
    %c0_7 = arith.constant 0 : index
    %9 = vector.load %arg5[%c0_6, %c0_7] : memref<32x1xf32, #tpu.memory_space<vmem>>, vector<32x1xf32>
    %cst_8 = arith.constant dense<0.000000e+00> : vector<16x1xf32>
    %10 = tpu.matmul %8, %9, %cst_8 {dimension_numbers = #tpu.dot_dimension_numbers<[1], [0], [0], [1], [0, 0, 1, 1], [], []>} : vector<16x32xf32>, vector<32x1xf32>, vector<16x1xf32> -> vector<16x1xf32>
    %c0_9 = arith.constant 0 : index
    %c0_10 = arith.constant 0 : index
    %11 = vector.load %arg6[%c0_9, %c0_10] : memref<16x1xf32, #tpu.memory_space<vmem>>, vector<16x1xf32>
    tpu.vector_store %arg6[%c0_9, %c0_10], %10 {strides = array<i32>} : memref<16x1xf32, #tpu.memory_space<vmem>>, vector<16x1xf32>,
    return
  }
  func.func @transform_0(%arg0: i32) -> (i32, i32) {
    %c0_i32 = arith.constant 0 : i32
    %c0_i32_0 = arith.constant 0 : i32
    %c0_i32_1 = arith.constant 0 : i32
    return %c0_i32, %c0_i32_0 : i32, i32
  }
  func.func @transform_1(%arg0: i32) -> (i32, i32) {
    %c0_i32 = arith.constant 0 : i32
    %c0_i32_0 = arith.constant 0 : i32
    %c0_i32_1 = arith.constant 0 : i32
    return %c0_i32, %c0_i32_0 : i32, i32
  }
  func.func @transform_2(%arg0: i32) -> (i32, i32) {
    %c0_i32 = arith.constant 0 : i32
    %c0_i32_0 = arith.constant 0 : i32
    return %arg0, %c0_i32 : i32, i32
  }
  func.func @transform_3(%arg0: i32) -> (i32, i32) {
    %c0_i32 = arith.constant 0 : i32
    %c0_i32_0 = arith.constant 0 : i32
    %c0_i32_1 = arith.constant 0 : i32
    return %c0_i32, %c0_i32_0 : i32, i32
  }
  func.func @transform_4(%arg0: i32) -> (i32, i32) {
    %c0_i32 = arith.constant 0 : i32
    %c0_i32_0 = arith.constant 0 : i32
    %c0_i32_1 = arith.constant 0 : i32
    return %c0_i32, %c0_i32_0 : i32, i32
  }
  func.func @transform_5(%arg0: i32) -> (i32, i32) {
    %c0_i32 = arith.constant 0 : i32
    %c0_i32_0 = arith.constant 0 : i32
    return %arg0, %c0_i32 : i32, i32
  }
}

</mosaic_0001>

<llo_original>
// kernel: tpu_custom_call.1
$region0: #{tpu_custom_call.1}
  #allocation0 [shape = 'u32[]', space=smem, size = 0x4, offset = 0x4, fixed_abs, tag = 'smem constant byte address 0x4 - core index']
  #allocation1 [shape = 'u32[144,128]{1,0:T(1,128)}', space=vmem, size = 0x12000, scoped, tag = 'internal scratch']
  #allocation2 [shape = 'f32[16,32]{1,0:T(8,128)}', space=vmem, size = 0x2000, scoped, tag = 'scratch operand']
  %s0 = inlined_call_operand.vmem [shape: s32[16,1], index: 0, kind: input, shape index: {}]
  %s1 = inlined_call_operand.vmem [shape: f32[2,32], index: 1, kind: input, shape index: {}]
  %s2 = inlined_call_operand.vmem [shape: bf16[16,32], index: 2, kind: input, shape index: {}]
  %s3 = inlined_call_operand.vmem [shape: bf16[32,32], index: 3, kind: input, shape index: {}]
  %s4 = inlined_call_operand.vmem [shape: f32[32,1], index: 4, kind: input, shape index: {}]
  %s5 = inlined_call_operand.vmem [shape: f32[16,1], index: 5, kind: output, shape index: {}]
  %s6 = sld [smem:[#allocation0]]
  $region34: #{tpu_custom_call.1} parent=0
    _
  %s8 = ssub.s32 1, %s6
  %s9 = scalar_select 0, %s8, %s6
  // Predicated region
  $region2: #{tpu_custom_call.1} parent=0 // pred_check
    _
  $region3: #{tpu_custom_call.1} parent=0 // pred_check_branch
    %11 = sbr.rel (0) target = $region5
  $region4: #{tpu_custom_call.1} parent=0 // pred_region
    _
  $region5: #{tpu_custom_call.1} parent=0 // pred_fallthru
    _
  // Predicated region
  $region6: #{tpu_custom_call.1} parent=0 // pred_check
    _
  $region7: #{tpu_custom_call.1} parent=0 // pred_check_branch
    %13 = sbr.rel (0) target = $region9
  $region8: #{tpu_custom_call.1} parent=0 // pred_region
    _
  $region9: #{tpu_custom_call.1} parent=0 // pred_fallthru
    _
  // Predicated region
  $region10: #{tpu_custom_call.1} parent=0 // pred_check
    _
  $region11: #{tpu_custom_call.1} parent=0 // pred_check_branch
    %15 = sbr.rel (0) target = $region13
  $region12: #{tpu_custom_call.1} parent=0 // pred_region
    _
  $region13: #{tpu_custom_call.1} parent=0 // pred_fallthru
    _
  // Predicated region
  $region14: #{tpu_custom_call.1} parent=0 // pred_check
    _
  $region15: #{tpu_custom_call.1} parent=0 // pred_check_branch
    %17 = sbr.rel (0) target = $region17
  $region16: #{tpu_custom_call.1} parent=0 // pred_region
    _
  $region17: #{tpu_custom_call.1} parent=0 // pred_fallthru
    _
  // Predicated region
  $region18: #{tpu_custom_call.1} parent=0 // pred_check
    _
  $region19: #{tpu_custom_call.1} parent=0 // pred_check_branch
    %19 = sbr.rel (0) target = $region21
  $region20: #{tpu_custom_call.1} parent=0 // pred_region
    _
  $region21: #{tpu_custom_call.1} parent=0 // pred_fallthru
    _
  %p21 = scmp.eq.s32.totalorder 0, 0
  // Predicated region
  $region22: #{tpu_custom_call.1} parent=0 // pred_check
    %p22 = pneg %p21
  $region23: #{tpu_custom_call.1} parent=0 // pred_check_branch
    %24 = sbr.rel (%p22) target = $region25
  $region24: #{tpu_custom_call.1} parent=0 // pred_region
    %v25 = vlaneseq
    %v26 = vand.u32 %v25, 127
    %v27 = vld [vmem:[%s0] sm:$0xff]
    %v28 = vld [vmem:[%s0 + $0x8] sm:$0xff]
    %29 = vset.pattern.permute.xlu0 0
    %30 = vperm.xlu0 %29, %v27
    %v31 = vpop.permute.xlu0 %30
    %32 = vset.pattern.permute.xlu0 0
    %33 = vperm.xlu0 %32, %v28
    %v34 = vpop.permute.xlu0 %33
    %vm35 = vcmp.eq.s32.totalorder %v31, %v26
    %vm36 = vcmp.eq.s32.totalorder %v34, %v26
    %v37 = vsel %vm35, 1, 0
    %v38 = vsel %vm36, 1, 0
    %v39 = vcvt.s32.f32 %v37
    %v40 = vcvt.s32.f32 %v38
    %v41 = vld [vmem:[%s1] sm:$0x3]
    %vm42 = vcmask 15360
    %v44 = vsel %vm42, %v39, 0
    %v47 = vsel %vm42, %v40, 0
    %vm49 = vcmask 1041408
    %v51 = vsel %vm49, %v41, 0
    %53 = vmatprep.subr.mxu0 0.0
    %54 = vmatpush1.msra.mxu0 %v51
    %55 = vmatprep.subr.mxu0 0.0
    %56 = vmatpush1.msra.mxu0 0.0
    %57 = vmatprep.subr.mxu0 0.0
    %58 = vmatpush1.msra.mxu0 0.0
    %59 = vmatprep.subr.mxu0 0.0
    %60 = vmatpush1.msra.mxu0 0.0
    %61 = vmatprep.subr.mxu0 0.0
    %62 = vmatpush1.msra.mxu0 0.0
    %63 = vmatprep.subr.mxu0 0.0
    %64 = vmatpush1.msra.mxu0 0.0
    %65 = vmatprep.subr.mxu0 0.0
    %66 = vmatpush1.msra.mxu0 0.0
    %67 = vmatprep.subr.mxu0 0.0
    %68 = vmatpush1.msra.mxu0 0.0
    %69 = vmatprep.subr.mxu0 0.0
    %70 = vmatpush1.msra.mxu0 0.0
    %71 = vmatprep.subr.mxu0 0.0
    %72 = vmatpush1.msra.mxu0 0.0
    %73 = vmatprep.subr.mxu0 0.0
    %74 = vmatpush1.msra.mxu0 0.0
    %75 = vmatprep.subr.mxu0 0.0
    %76 = vmatpush1.msra.mxu0 0.0
    %77 = vmatprep.subr.mxu0 0.0
    %78 = vmatpush1.msra.mxu0 0.0
    %79 = vmatprep.subr.mxu0 0.0
    %80 = vmatpush1.msra.mxu0 0.0
    %81 = vmatprep.subr.mxu0 0.0
    %82 = vmatpush1.msra.mxu0 0.0
    %83 = vmatprep.subr.mxu0 0.0
    %84 = vmatpush1.msra.mxu0 0.0
    %85 = vmatprep.subr.mxu0 0.0
    %86 = vmatpush1.msra.mxu0 0.0
    %87 = vmatprep.subr.mxu0 0.0
    %88 = vmatpush1.msra.mxu0 0.0
    %89 = vmatprep.subr.mxu0 0.0
    %90 = vmatpush1.msra.mxu0 0.0
    %91 = vmatprep.subr.mxu0 0.0
    %92 = vmatpush1.msra.mxu0 0.0
    %93 = vmatprep.subr.mxu0 0.0
    %94 = vmatpush1.msra.mxu0 0.0
    %95 = vmatprep.subr.mxu0 0.0
    %96 = vmatpush1.msra.mxu0 0.0
    %97 = vmatprep.subr.mxu0 0.0
    %98 = vmatpush1.msra.mxu0 0.0
    %99 = vmatprep.subr.mxu0 0.0
    %100 = vmatpush1.msra.mxu0 0.0
    %101 = vmatprep.subr.mxu0 0.0
    %102 = vmatpush1.msra.mxu0 0.0
    %103 = vmatprep.subr.mxu0 0.0
    %104 = vmatpush1.msra.mxu0 0.0
    %105 = vmatprep.subr.mxu0 0.0
    %106 = vmatpush1.msra.mxu0 0.0
    %107 = vmatprep.subr.mxu0 0.0
    %108 = vmatpush1.msra.mxu0 0.0
    %109 = vmatprep.subr.mxu0 0.0
    %110 = vmatpush1.msra.mxu0 0.0
    %111 = vmatprep.subr.mxu0 0.0
    %112 = vmatpush1.msra.mxu0 0.0
    %113 = vmatprep.subr.mxu0 0.0
    %114 = vmatpush1.msra.mxu0 0.0
    %115 = vmatprep.subr.mxu0 0.0
    %116 = vmatpush1.msra.mxu0 0.0
    %117 = vmatprep.mubr.f32.mxu0 0.0
    %118 = vmatmul.mubr.f32.gmra.mrb[0].mxu0 %v44
    %v119 = vpop.f32.mrb[0].mxu0
    %v120 = vadd.f32 0.0, %v119
    %v121 = vpop.f32.mrb[0].mxu0
    %122 = vmatprep.mubr.f32.mxu0 0.0
    %123 = vmatmul.mubr.f32.gmra.mrb[0].mxu0 %v47
    %v124 = vpop.f32.mrb[0].mxu0
    %v125 = vadd.f32 0.0, %v124
    %v126 = vpop.f32.mrb[0].mxu0
    %127 = vdwg.mxu0
    %vm128 = vcmask 261120
    %129 = vst.msk [vmem:[#allocation2] sm:$0xff] %vm128, %v120
    %130 = vst.msk [vmem:[#allocation2 + $0x8] sm:$0xff] %vm128, %v125
  $region25: #{tpu_custom_call.1} parent=0 // pred_fallthru
    _
  %v131 = vld [vmem:[%s2] sm:$0xf]
  %v132 = vld [vmem:[%s2 + $0x4] sm:$0xf]
  %v133 = vld [vmem:[%s3] sm:$0xf]
  %v134 = vld [vmem:[%s3 + $0x4] sm:$0xf]
  %v135 = vld [vmem:[%s3 + $0x8] sm:$0xf]
  %v136 = vld [vmem:[%s3 + $0xc] sm:$0xf]
  %v137 = vld [vmem:[#allocation2] sm:$0xff]
  %v138 = vld [vmem:[#allocation2 + $0x8] sm:$0xff]
  %v141 = vunpack.c.l.b16 %v131
  %v142 = vunpack.c.l.b16 %v132
  %v143 = vpack.c.b16 %v142, %v141
  %v148 = vunpack.c.l.b16 %v133
  %v149 = vunpack.c.l.b16 %v134
  %v150 = vunpack.c.l.b16 %v135
  %v151 = vunpack.c.l.b16 %v136
  %v152 = vpack.c.b16 %v149, %v148
  %v153 = vpack.c.b16 %v151, %v150
  %vm156 = vcmask 261120
  %v158 = vsel %vm156, %v143, 0
  %160 = vmatprep.subr.bf16.mxu0 0
  %161 = vmatpush1.bf16.msra.mxu0 %v152
  %162 = vmatprep.subr.bf16.mxu0 0
  %163 = vmatpush1.bf16.msra.mxu0 %v153
  %164 = vmatprep.subr.bf16.mxu0 0
  %165 = vmatpush1.bf16.msra.mxu0 0
  %166 = vmatprep.subr.bf16.mxu0 0
  %167 = vmatpush1.bf16.msra.mxu0 0
  %168 = vmatprep.subr.bf16.mxu0 0
  %169 = vmatpush1.bf16.msra.mxu0 0
  %170 = vmatprep.subr.bf16.mxu0 0
  %171 = vmatpush1.bf16.msra.mxu0 0
  %172 = vmatprep.subr.bf16.mxu0 0
  %173 = vmatpush1.bf16.msra.mxu0 0
  %174 = vmatprep.subr.bf16.mxu0 0
  %175 = vmatpush1.bf16.msra.mxu0 0
  %176 = vmatprep.subr.bf16.mxu0 0
  %177 = vmatpush1.bf16.msra.mxu0 0
  %178 = vmatprep.subr.bf16.mxu0 0
  %179 = vmatpush1.bf16.msra.mxu0 0
  %180 = vmatprep.subr.bf16.mxu0 0
  %181 = vmatpush1.bf16.msra.mxu0 0
  %182 = vmatprep.subr.bf16.mxu0 0
  %183 = vmatpush1.bf16.msra.mxu0 0
  %184 = vmatprep.subr.bf16.mxu0 0
  %185 = vmatpush1.bf16.msra.mxu0 0
  %186 = vmatprep.subr.bf16.mxu0 0
  %187 = vmatpush1.bf16.msra.mxu0 0
  %188 = vmatprep.subr.bf16.mxu0 0
  %189 = vmatpush1.bf16.msra.mxu0 0
  %190 = vmatprep.subr.bf16.mxu0 0
  %191 = vmatpush1.bf16.msra.mxu0 0
  %192 = vmatprep.mubr.bf16.mxu0 0
  %193 = vmatmul.mubr.bf16.gmra.mrb[0].mxu0 %v158
  %v194 = vpop.f32.mrb[0].mxu0
  %v195 = vadd.f32 %v137, %v194
  %v196 = vpop.f32.mrb[0].mxu0
  %v197 = vpop.f32.mrb[0].mxu0
  %v198 = vadd.f32 %v138, %v197
  %v199 = vpop.f32.mrb[0].mxu0
  %200 = vdwg.mxu0
  %v201 = vtanh.pop %v195
  %v202 = vtanh.pop %v198
  %v203 = vld [vmem:[%s4] sm:$0xff]
  %v204 = vld [vmem:[%s4 + $0x8] sm:$0xff]
  %v205 = vld [vmem:[%s4 + $0x10] sm:$0xff]
  %v206 = vld [vmem:[%s4 + $0x18] sm:$0xff]
  %v208 = vsel %vm156, %v201, 0
  %v211 = vsel %vm156, %v202, 0
  %213 = vmatprep.subr.mxu0 0.0
  %214 = vmatpush1.msra.mxu0 %v203
  %215 = vmatprep.subr.mxu0 0.0
  %216 = vmatpush1.msra.mxu0 %v204
  %217 = vmatprep.subr.mxu0 0.0
  %218 = vmatpush1.msra.mxu0 %v205
  %219 = vmatprep.subr.mxu0 0.0
  %220 = vmatpush1.msra.mxu0 %v206
  %221 = vmatprep.subr.mxu0 0.0
  %222 = vmatpush1.msra.mxu0 0.0
  %223 = vmatprep.subr.mxu0 0.0
  %224 = vmatpush1.msra.mxu0 0.0
  %225 = vmatprep.subr.mxu0 0.0
  %226 = vmatpush1.msra.mxu0 0.0
  %227 = vmatprep.subr.mxu0 0.0
  %228 = vmatpush1.msra.mxu0 0.0
  %229 = vmatprep.subr.mxu0 0.0
  %230 = vmatpush1.msra.mxu0 0.0
  %231 = vmatprep.subr.mxu0 0.0
  %232 = vmatpush1.msra.mxu0 0.0
  %233 = vmatprep.subr.mxu0 0.0
  %234 = vmatpush1.msra.mxu0 0.0
  %235 = vmatprep.subr.mxu0 0.0
  %236 = vmatpush1.msra.mxu0 0.0
  %237 = vmatprep.subr.mxu0 0.0
  %238 = vmatpush1.msra.mxu0 0.0
  %239 = vmatprep.subr.mxu0 0.0
  %240 = vmatpush1.msra.mxu0 0.0
  %241 = vmatprep.subr.mxu0 0.0
  %242 = vmatpush1.msra.mxu0 0.0
  %243 = vmatprep.subr.mxu0 0.0
  %244 = vmatpush1.msra.mxu0 0.0
  %245 = vmatprep.subr.mxu0 0.0
  %246 = vmatpush1.msra.mxu0 0.0
  %247 = vmatprep.subr.mxu0 0.0
  %248 = vmatpush1.msra.mxu0 0.0
  %249 = vmatprep.subr.mxu0 0.0
  %250 = vmatpush1.msra.mxu0 0.0
  %251 = vmatprep.subr.mxu0 0.0
  %252 = vmatpush1.msra.mxu0 0.0
  %253 = vmatprep.subr.mxu0 0.0
  %254 = vmatpush1.msra.mxu0 0.0
  %255 = vmatprep.subr.mxu0 0.0
  %256 = vmatpush1.msra.mxu0 0.0
  %257 = vmatprep.subr.mxu0 0.0
  %258 = vmatpush1.msra.mxu0 0.0
  %259 = vmatprep.subr.mxu0 0.0
  %260 = vmatpush1.msra.mxu0 0.0
  %261 = vmatprep.subr.mxu0 0.0
  %262 = vmatpush1.msra.mxu0 0.0
  %263 = vmatprep.subr.mxu0 0.0
  %264 = vmatpush1.msra.mxu0 0.0
  %265 = vmatprep.subr.mxu0 0.0
  %266 = vmatpush1.msra.mxu0 0.0
  %267 = vmatprep.subr.mxu0 0.0
  %268 = vmatpush1.msra.mxu0 0.0
  %269 = vmatprep.subr.mxu0 0.0
  %270 = vmatpush1.msra.mxu0 0.0
  %271 = vmatprep.subr.mxu0 0.0
  %272 = vmatpush1.msra.mxu0 0.0
  %273 = vmatprep.subr.mxu0 0.0
  %274 = vmatpush1.msra.mxu0 0.0
  %275 = vmatprep.subr.mxu0 0.0
  %276 = vmatpush1.msra.mxu0 0.0
  %277 = vmatprep.mubr.f32.mxu0 0.0
  %278 = vmatmul.mubr.f32.gmra.mrb[0].mxu0 %v208
  %v279 = vpop.f32.mrb[0].mxu0
  %v280 = vadd.f32 0.0, %v279
  %v281 = vpop.f32.mrb[0].mxu0
  %282 = vmatprep.mubr.f32.mxu0 0.0
  %283 = vmatmul.mubr.f32.gmra.mrb[0].mxu0 %v211
  %v284 = vpop.f32.mrb[0].mxu0
  %v285 = vadd.f32 0.0, %v284
  %v286 = vpop.f32.mrb[0].mxu0
  %287 = vdwg.mxu0
  %vm288 = vcmask 7168
  %289 = vst.msk [vmem:[%s5] sm:$0xff] %vm288, %v280
  %290 = vst.msk [vmem:[%s5 + $0x8] sm:$0xff] %vm288, %v285
  // Predicated region
  $region26: #{tpu_custom_call.1} parent=0 // pred_check
    _
  $region27: #{tpu_custom_call.1} parent=0 // pred_check_branch
    %292 = sbr.rel (0) target = $region29
  $region28: #{tpu_custom_call.1} parent=0 // pred_region
    _
  $region29: #{tpu_custom_call.1} parent=0 // pred_fallthru
    _
  // Predicated region
  $region30: #{tpu_custom_call.1} parent=0 // pred_check
    _
  $region31: #{tpu_custom_call.1} parent=0 // pred_check_branch
    %294 = sbr.rel (0) target = $region33
  $region32: #{tpu_custom_call.1} parent=0 // pred_region
    _
  $region33: #{tpu_custom_call.1} parent=0 // pred_fallthru
    _

</llo_original>
